<compile_context>
chip_gen: v7x
topology: tpu7x:2x2x1
jax: 0.10.0
libtpu: 0.0.40
codegen_flags: <defaults>
</compile_context>

<pallas_src>
import functools

import jax
import jax.numpy as jnp
from jax.experimental import pallas as pl
from jax.experimental.pallas import tpu as pltpu

_LANES = 128
_SUBLANES = 8
_MAX_TILE_ROWS = 2048                      # 2048 x 128 x 4B = 1 MiB per stream
_VMEM_INPUT_BUDGET = 8 * 1024 * 1024       # bytes for (streams x 2 buffers x tile)


# ----------------------------------------------------------------------------
# Kernels
# ----------------------------------------------------------------------------
def _fused_sse_kernel(n_recons, x_ref, *refs):
    """For each reconstruction r_j: accumulate (8,128) partials of sum((x-r_j)^2).

    refs = (r_0, ..., r_{n-1}, o_ref); o_ref has shape (n_recons, 8, 128) and is
    resident in VMEM across the whole grid (same output block every step).
    """
    recon_refs = refs[:n_recons]
    o_ref = refs[n_recons]

    @pl.when(pl.program_id(0) == 0)
    def _():
        o_ref[...] = jnp.zeros_like(o_ref)

    x = x_ref[...].astype(jnp.float32)
    for j, r_ref in enumerate(recon_refs):
        d = x - r_ref[...].astype(jnp.float32)
        # Fold (tile_rows, 128) -> (8, 128) partials: pure vreg adds (VPU),
        # the cross-lane reduce is deferred to the wrapper (done once).
        o_ref[j] += jnp.sum((d * d).reshape(-1, _SUBLANES, _LANES), axis=0)


def _kl_kernel(m_ref, lv_ref, o_ref):
    """Accumulate (8,128) partials of sum(1 + log_var - mean^2 - exp(log_var))."""
    @pl.when(pl.program_id(0) == 0)
    def _():
        o_ref[...] = jnp.zeros_like(o_ref)

    m = m_ref[...].astype(jnp.float32)
    lv = lv_ref[...].astype(jnp.float32)
    t = 1.0 + lv - m * m - jnp.exp(lv)
    o_ref[...] += jnp.sum(t.reshape(-1, _SUBLANES, _LANES), axis=0)


# ----------------------------------------------------------------------------
# Wrappers (glue: flatten / pad / tile, then pallas_call)
# ----------------------------------------------------------------------------
def _pick_tile_rows(numel, n_streams):
    """Largest tile (multiple of 8 rows) that keeps double-buffered streams in budget."""
    rows = pl.cdiv(numel, _LANES)
    rows = ((rows + _SUBLANES - 1) // _SUBLANES) * _SUBLANES
    budget_rows = _VMEM_INPUT_BUDGET // (n_streams * 2 * _LANES * 4)
    tile = min(_MAX_TILE_ROWS, max(budget_rows, _SUBLANES), rows)
    tile = (tile // _SUBLANES) * _SUBLANES
    return max(tile, _SUBLANES)


def _to_rows(x, tile_rows):
    """Flatten, zero-pad (only if needed) to a multiple of tile_rows*128, reshape."""
    flat = x.reshape(-1)
    block = tile_rows * _LANES
    pad = (-flat.shape[0]) % block
    if pad:
        flat = jnp.pad(flat, (0, pad))
    return flat.reshape(-1, _LANES)


def fused_recon_losses(x, recons):
    """Returns [sum((x - r)^2) for r in recons] using one streaming kernel."""
    recons = list(recons)
    n = len(recons)
    if n == 0:
        return []

    tile_rows = _pick_tile_rows(x.size, n + 1)
    x2 = _to_rows(x, tile_rows)
    r2 = [_to_rows(r, tile_rows) for r in recons]
    rows = x2.shape[0]
    grid = (rows // tile_rows,)

    in_spec = pl.BlockSpec((tile_rows, _LANES), lambda i: (i, 0))
    partials = pl.pallas_call(
        functools.partial(_fused_sse_kernel, n),
        out_shape=jax.ShapeDtypeStruct((n, _SUBLANES, _LANES), jnp.float32),
        grid_spec=pltpu.PrefetchScalarGridSpec(
            num_scalar_prefetch=0,
            grid=grid,
            in_specs=[in_spec] * (n + 1),
            out_specs=pl.BlockSpec((n, _SUBLANES, _LANES), lambda i: (0, 0, 0)),
        ),
        compiler_params=pltpu.CompilerParams(
            dimension_semantics=("arbitrary",)),
    )(x2, *r2)

    sums = jnp.sum(partials, axis=(1, 2))   # one cheap final reduce per recon
    return [sums[j] for j in range(n)]


def recon_loss(inputs, outputs):
    """F.mse_loss(inputs, outputs, reduction='sum')."""
    return fused_recon_losses(inputs, [outputs])[0]


def kl_loss(z_mean, z_log_var):
    """-0.5 * sum(1 + z_log_var - z_mean^2 - exp(z_log_var))."""
    tile_rows = _pick_tile_rows(z_mean.size, 2)
    m2 = _to_rows(z_mean, tile_rows)
    lv2 = _to_rows(z_log_var, tile_rows)
    rows = m2.shape[0]
    grid = (rows // tile_rows,)

    in_spec = pl.BlockSpec((tile_rows, _LANES), lambda i: (i, 0))
    partials = pl.pallas_call(
        _kl_kernel,
        out_shape=jax.ShapeDtypeStruct((_SUBLANES, _LANES), jnp.float32),
        grid_spec=pltpu.PrefetchScalarGridSpec(
            num_scalar_prefetch=0,
            grid=grid,
            in_specs=[in_spec, in_spec],
            out_specs=pl.BlockSpec((_SUBLANES, _LANES), lambda i: (0, 0)),
        ),
        compiler_params=pltpu.CompilerParams(
            dimension_semantics=("arbitrary",)),
    )(m2, lv2)

    return -0.5 * jnp.sum(partials)


# ----------------------------------------------------------------------------
# VAELoss module equivalent
# ----------------------------------------------------------------------------
class VAELoss:
    def __init__(self, adaptive_mode=None, beta_soft_adapt=None):
        # TODO(synk): AdaptiveMode / Adapt source not provided; with mode=None we
        # fall back to the plain unweighted sum (same as 'loss_sum').
        self.adaptive_mode = adaptive_mode
        self.beta_soft_adapt = beta_soft_adapt if beta_soft_adapt is not None else 1e-4

    def _adapt(self, recon_losses, kl, training):
        total = kl
        for r in recon_losses:
            total = total + r
        return total

    def __call__(self, inputs, outputs, training=False):
        (reconstructions_unmasked, reconstructions_masked,
         z, z_mean, z_log_var) = outputs
        x = inputs[0]

        # Every reconstruction shares the same input `x`; fuse all SSE
        # reductions into ONE kernel so `x` is DMA'd from HBM exactly once.
        masked_items = [(i, r) for i, r in enumerate(reconstructions_masked)
                        if r is not None]
        unmasked_items = list(enumerate(reconstructions_unmasked))
        all_recons = [r for _, r in masked_items] + [r for _, r in unmasked_items]
        sse = fused_recon_losses(x, all_recons)

        loss_dict = {}
        n_masked = len(masked_items)
        for k, (i, _) in enumerate(masked_items):
            loss_dict[f"recon_loss_{i}(MASKED)"] = sse[k]

        recon_losses = []
        for k, (i, _) in enumerate(unmasked_items):
            loss_dict[f"recon_loss_{i}"] = sse[n_masked + k]
            recon_losses.append(loss_dict[f"recon_loss_{i}"])

        kl = kl_loss(z_mean, z_log_var)   # computed once, reused below
        loss_dict["kl_loss"] = kl

        if "recon_loss_0(MASKED)" in loss_dict:
            one_recon_loss = loss_dict["recon_loss_0(MASKED)"] + kl
            loss_dict["recon_0(MASKED) + kl_loss"] = one_recon_loss
        else:
            one_recon_loss = loss_dict["recon_loss_0"] + kl
            loss_dict["recon_0 + kl_loss"] = one_recon_loss

        loss_dict["loss_sum"] = sum(recon_losses) + kl
        loss_dict["loss"] = self._adapt(recon_losses, kl, training)
        return loss_dict


# ----------------------------------------------------------------------------
# Main
# ----------------------------------------------------------------------------
if __name__ == "__main__":
    key = jax.random.PRNGKey(0)
    k_x, k_r0, k_r1, k_rm, k_mu, k_lv = jax.random.split(key, 6)

    B, C, H, W = 2, 4, 16, 16     # image shape (NCHW, same as PyTorch)
    Z = 32                        # latent dim

    x = jax.random.normal(k_x, (B, C, H, W), dtype=jnp.float32)
    recon0 = jax.random.normal(k_r0, (B, C, H, W), dtype=jnp.float32)
    recon1 = jax.random.normal(k_r1, (B, C, H, W), dtype=jnp.float32)
    recon0_masked = jax.random.normal(k_rm, (B, C, H, W), dtype=jnp.float32)
    z_mean = jax.random.normal(k_mu, (B, Z), dtype=jnp.float32)
    z_log_var = 0.1 * jax.random.normal(k_lv, (B, Z), dtype=jnp.float32)
    z = z_mean + jnp.exp(0.5 * z_log_var)  # placeholder sample (unused by loss)

    inputs = (x, None, None)
    outputs = (
        [recon0, recon1],          # reconstructions_unmasked
        [recon0_masked, None],     # reconstructions_masked
        z, z_mean, z_log_var,
    )

    loss_mod = VAELoss(adaptive_mode=None)
    loss_dict = loss_mod(inputs, outputs, training=False)
    jax.block_until_ready(loss_dict)

    # Pure-JAX reference check.
    def ref_sse(a, b):
        return jnp.sum((a - b) ** 2)

    def ref_kl(m, lv):
        return -0.5 * jnp.sum(1.0 + lv - m * m - jnp.exp(lv))

    ref = {
        "recon_loss_0(MASKED)": ref_sse(x, recon0_masked),
        "recon_loss_0": ref_sse(x, recon0),
        "recon_loss_1": ref_sse(x, recon1),
        "kl_loss": ref_kl(z_mean, z_log_var),
    }
    ref["recon_0(MASKED) + kl_loss"] = ref["recon_loss_0(MASKED)"] + ref["kl_loss"]
    ref["loss_sum"] = ref["recon_loss_0"] + ref["recon_loss_1"] + ref["kl_loss"]
    ref["loss"] = ref["loss_sum"]

    for k, v in ref.items():
        got = loss_dict[k]
        assert jnp.allclose(got, v, rtol=1e-5, atol=1e-3), (k, got, v)

    print("KERNEL_OK")
</pallas_src>

<mosaic_0001>
module attributes {stable_mosaic.version = 11 : i64} {
  func.func @_fused_sse_kernel(%arg0: i32, %arg1: memref<16x128xf32, #tpu.memory_space<vmem>>, %arg2: memref<16x128xf32, #tpu.memory_space<vmem>>, %arg3: memref<16x128xf32, #tpu.memory_space<vmem>>, %arg4: memref<16x128xf32, #tpu.memory_space<vmem>>, %arg5: memref<3x8x128xf32, #tpu.memory_space<vmem>>) attributes {dimension_semantics = [#tpu.dimension_semantics<arbitrary>], iteration_bounds = array<i64: 1>, scalar_prefetch = 0 : i64, scratch_operands = 0 : i64, tpu.core_type = #tpu.core_type<tc>, window_params = [{transform_indices = @transform_0, window_bounds = array<i64: 16, 128>}, {transform_indices = @transform_1, window_bounds = array<i64: 16, 128>}, {transform_indices = @transform_2, window_bounds = array<i64: 16, 128>}, {transform_indices = @transform_3, window_bounds = array<i64: 16, 128>}, {pipeline_mode = #tpu.pipeline_mode<synchronous>, transform_indices = @transform_4, window_bounds = array<i64: 3, 8, 128>}]} {
    %c0_i32 = arith.constant 0 : i32
    %0 = arith.cmpi eq, %arg0, %c0_i32 : i32
    %1 = arith.extui %0 : i1 to i32
    %c0_i32_0 = arith.constant 0 : i32
    %2 = arith.cmpi ne, %1, %c0_i32_0 : i32
    scf.if %2 {
      %cst_26 = arith.constant 0.000000e+00 : f32
      %37 = vector.broadcast %cst_26 : f32 to vector<3x8x128xf32>
      %c0_27 = arith.constant 0 : index
      %c0_28 = arith.constant 0 : index
      %c0_29 = arith.constant 0 : index
      %38 = vector.load %arg5[%c0_27, %c0_28, %c0_29] : memref<3x8x128xf32, #tpu.memory_space<vmem>>, vector<3x8x128xf32>
      tpu.vector_store %arg5[%c0_27, %c0_28, %c0_29], %37 {strides = array<i32>} : memref<3x8x128xf32, #tpu.memory_space<vmem>>, vector<3x8x128xf32>,
    } else {
    }
    %c0 = arith.constant 0 : index
    %c0_1 = arith.constant 0 : index
    %3 = vector.load %arg1[%c0, %c0_1] : memref<16x128xf32, #tpu.memory_space<vmem>>, vector<16x128xf32>
    %c0_2 = arith.constant 0 : index
    %c0_3 = arith.constant 0 : index
    %4 = vector.load %arg2[%c0_2, %c0_3] : memref<16x128xf32, #tpu.memory_space<vmem>>, vector<16x128xf32>
    %5 = arith.subf %3, %4 : vector<16x128xf32>
    %c0_4 = arith.constant 0 : index
    %c0_5 = arith.constant 0 : index
    %c0_6 = arith.constant 0 : index
    %6 = vector.load %arg5[%c0_4, %c0_5, %c0_6] : memref<3x8x128xf32, #tpu.memory_space<vmem>>, vector<1x8x128xf32>
    %7 = vector.shape_cast %6 : vector<1x8x128xf32> to vector<8x128xf32>
    %8 = arith.mulf %5, %5 : vector<16x128xf32>
    %9 = vector.shape_cast %8 : vector<16x128xf32> to vector<2x8x128xf32>
    %cst = arith.constant dense<0.000000e+00> : vector<8x128xf32>
    %10 = vector.multi_reduction <add>, %9, %cst [0] : vector<2x8x128xf32> to vector<8x128xf32>
    %11 = arith.addf %7, %10 : vector<8x128xf32>
    %c0_7 = arith.constant 0 : index
    %c0_8 = arith.constant 0 : index
    %c0_9 = arith.constant 0 : index
    %12 = vector.load %arg5[%c0_7, %c0_8, %c0_9] : memref<3x8x128xf32, #tpu.memory_space<vmem>>, vector<1x8x128xf32>
    %13 = vector.shape_cast %12 : vector<1x8x128xf32> to vector<8x128xf32>
    %14 = vector.shape_cast %11 : vector<8x128xf32> to vector<1x8x128xf32>
    tpu.vector_store %arg5[%c0_7, %c0_8, %c0_9], %14 {strides = array<i32>} : memref<3x8x128xf32, #tpu.memory_space<vmem>>, vector<1x8x128xf32>,
    %c0_10 = arith.constant 0 : index
    %c0_11 = arith.constant 0 : index
    %15 = vector.load %arg3[%c0_10, %c0_11] : memref<16x128xf32, #tpu.memory_space<vmem>>, vector<16x128xf32>
    %16 = arith.subf %3, %15 : vector<16x128xf32>
    %c1 = arith.constant 1 : index
    %c0_12 = arith.constant 0 : index
    %c0_13 = arith.constant 0 : index
    %17 = vector.load %arg5[%c1, %c0_12, %c0_13] : memref<3x8x128xf32, #tpu.memory_space<vmem>>, vector<1x8x128xf32>
    %18 = vector.shape_cast %17 : vector<1x8x128xf32> to vector<8x128xf32>
    %19 = arith.mulf %16, %16 : vector<16x128xf32>
    %20 = vector.shape_cast %19 : vector<16x128xf32> to vector<2x8x128xf32>
    %cst_14 = arith.constant dense<0.000000e+00> : vector<8x128xf32>
    %21 = vector.multi_reduction <add>, %20, %cst_14 [0] : vector<2x8x128xf32> to vector<8x128xf32>
    %22 = arith.addf %18, %21 : vector<8x128xf32>
    %c1_15 = arith.constant 1 : index
    %c0_16 = arith.constant 0 : index
    %c0_17 = arith.constant 0 : index
    %23 = vector.load %arg5[%c1_15, %c0_16, %c0_17] : memref<3x8x128xf32, #tpu.memory_space<vmem>>, vector<1x8x128xf32>
    %24 = vector.shape_cast %23 : vector<1x8x128xf32> to vector<8x128xf32>
    %25 = vector.shape_cast %22 : vector<8x128xf32> to vector<1x8x128xf32>
    tpu.vector_store %arg5[%c1_15, %c0_16, %c0_17], %25 {strides = array<i32>} : memref<3x8x128xf32, #tpu.memory_space<vmem>>, vector<1x8x128xf32>,
    %c0_18 = arith.constant 0 : index
    %c0_19 = arith.constant 0 : index
    %26 = vector.load %arg4[%c0_18, %c0_19] : memref<16x128xf32, #tpu.memory_space<vmem>>, vector<16x128xf32>
    %27 = arith.subf %3, %26 : vector<16x128xf32>
    %c2 = arith.constant 2 : index
    %c0_20 = arith.constant 0 : index
    %c0_21 = arith.constant 0 : index
    %28 = vector.load %arg5[%c2, %c0_20, %c0_21] : memref<3x8x128xf32, #tpu.memory_space<vmem>>, vector<1x8x128xf32>
    %29 = vector.shape_cast %28 : vector<1x8x128xf32> to vector<8x128xf32>
    %30 = arith.mulf %27, %27 : vector<16x128xf32>
    %31 = vector.shape_cast %30 : vector<16x128xf32> to vector<2x8x128xf32>
    %cst_22 = arith.constant dense<0.000000e+00> : vector<8x128xf32>
    %32 = vector.multi_reduction <add>, %31, %cst_22 [0] : vector<2x8x128xf32> to vector<8x128xf32>
    %33 = arith.addf %29, %32 : vector<8x128xf32>
    %c2_23 = arith.constant 2 : index
    %c0_24 = arith.constant 0 : index
    %c0_25 = arith.constant 0 : index
    %34 = vector.load %arg5[%c2_23, %c0_24, %c0_25] : memref<3x8x128xf32, #tpu.memory_space<vmem>>, vector<1x8x128xf32>
    %35 = vector.shape_cast %34 : vector<1x8x128xf32> to vector<8x128xf32>
    %36 = vector.shape_cast %33 : vector<8x128xf32> to vector<1x8x128xf32>
    tpu.vector_store %arg5[%c2_23, %c0_24, %c0_25], %36 {strides = array<i32>} : memref<3x8x128xf32, #tpu.memory_space<vmem>>, vector<1x8x128xf32>,
    return
  }
  func.func @transform_0(%arg0: i32) -> (i32, i32) {
    %c0_i32 = arith.constant 0 : i32
    %c0_i32_0 = arith.constant 0 : i32
    return %arg0, %c0_i32 : i32, i32
  }
  func.func @transform_1(%arg0: i32) -> (i32, i32) {
    %c0_i32 = arith.constant 0 : i32
    %c0_i32_0 = arith.constant 0 : i32
    return %arg0, %c0_i32 : i32, i32
  }
  func.func @transform_2(%arg0: i32) -> (i32, i32) {
    %c0_i32 = arith.constant 0 : i32
    %c0_i32_0 = arith.constant 0 : i32
    return %arg0, %c0_i32 : i32, i32
  }
  func.func @transform_3(%arg0: i32) -> (i32, i32) {
    %c0_i32 = arith.constant 0 : i32
    %c0_i32_0 = arith.constant 0 : i32
    return %arg0, %c0_i32 : i32, i32
  }
  func.func @transform_4(%arg0: i32) -> (i32, i32, i32) {
    %c0_i32 = arith.constant 0 : i32
    %c0_i32_0 = arith.constant 0 : i32
    %c0_i32_1 = arith.constant 0 : i32
    %c0_i32_2 = arith.constant 0 : i32
    return %c0_i32, %c0_i32_0, %c0_i32_1 : i32, i32, i32
  }
}

</mosaic_0001>

<llo_original>
// kernel: tpu_custom_call.1
$region0: #{tpu_custom_call.1}
  #allocation0 [shape = 'u32[]', space=smem, size = 0x4, offset = 0x4, fixed_abs, tag = 'smem constant byte address 0x4 - core index']
  #allocation1 [shape = 'u32[144,128]{1,0:T(1,128)}', space=vmem, size = 0x12000, scoped, tag = 'internal scratch']
  %s0 = inlined_call_operand.hbm [shape: f32[16,128], index: 0, kind: input, shape index: {}]
  %s1 = inlined_call_operand.hbm [shape: f32[16,128], index: 1, kind: input, shape index: {}]
  %s2 = inlined_call_operand.hbm [shape: f32[16,128], index: 2, kind: input, shape index: {}]
  %s3 = inlined_call_operand.hbm [shape: f32[16,128], index: 3, kind: input, shape index: {}]
  %s4 = inlined_call_operand.hbm [shape: f32[3,8,128], index: 4, kind: output, shape index: {}]
  %s5 = sld [smem:[#allocation0]]
  $region46: #{tpu_custom_call.1} parent=0
    _
  %s7 = ssub.s32 1, %s5
  %s8 = scalar_select 0, %s7, %s5
  $region1: #{tpu_custom_call.1} parent=0
    #allocation2 [shape = 'u8[8192]{0}', space=vmem, size = 0x2000, scoped, tag = 'input window, operand 0, single buffered']
    #allocation3 [shape = 's32[1]{0}', space=sflag, size = 0x4, scoped, tag = 'scoped memory for tpu_custom_call.1']
    #allocation4 [shape = 's32[1]{0}', space=sflag, size = 0x4, scoped, tag = 'scoped memory for tpu_custom_call.1']
    #allocation5 [shape = 'u8[8192]{0}', space=vmem, size = 0x2000, scoped, tag = 'input window, operand 1, single buffered']
    #allocation6 [shape = 's32[1]{0}', space=sflag, size = 0x4, scoped, tag = 'scoped memory for tpu_custom_call.1']
    #allocation7 [shape = 'u8[8192]{0}', space=vmem, size = 0x2000, scoped, tag = 'input window, operand 2, single buffered']
    #allocation8 [shape = 'u8[8192]{0}', space=vmem, size = 0x2000, scoped, tag = 'input window, operand 3, single buffered']
    #allocation9 [shape = 's32[1]{0}', space=sflag, size = 0x4, scoped, tag = 'scoped memory for tpu_custom_call.1']
    #allocation10 [shape = 'u8[12288]{0}', space=vmem, size = 0x3000, scoped, tag = 'output window, operand 0, single buffered']
    %9 = vsyncpa [#allocation3], 0
    %10 = vsyncpa [#allocation6], 0
    %11 = vsyncpa [#allocation9], 0
    %12 = vsyncpa [#allocation4], 0
    // Predicated region
    $region2: #{tpu_custom_call.1} parent=1 // pred_check
      _
    $region3: #{tpu_custom_call.1} parent=1 // pred_check_branch
      %14 = sbr.rel (0) target = $region5
    $region4: #{tpu_custom_call.1} parent=1 // pred_region
      %s16 = ssub.s32 256, 256
      %17 = vsyncadd [#allocation3], %s16
      %s18 = sshll.u32 [#allocation2], 4
      %s19 = int_to_ptr.vmem [resolvable:$true] %s18
      %24 = dma.hbm_to_vmem [thread:$0]  %s0, 256, %s19, [#allocation3], 128, 128, 8
    $region5: #{tpu_custom_call.1} parent=1 // pred_fallthru
      _
    // Predicated region
    $region6: #{tpu_custom_call.1} parent=1 // pred_check
      _
    $region7: #{tpu_custom_call.1} parent=1 // pred_check_branch
      %26 = sbr.rel (0) target = $region9
    $region8: #{tpu_custom_call.1} parent=1 // pred_region
      %s28 = ssub.s32 256, 256
      %29 = vsyncadd [#allocation6], %s28
      %s30 = sshll.u32 [#allocation5], 4
      %s31 = int_to_ptr.vmem [resolvable:$true] %s30
      %36 = dma.hbm_to_vmem [thread:$0]  %s1, 256, %s31, [#allocation6], 128, 128, 8
    $region9: #{tpu_custom_call.1} parent=1 // pred_fallthru
      _
    // Predicated region
    $region10: #{tpu_custom_call.1} parent=1 // pred_check
      _
    $region11: #{tpu_custom_call.1} parent=1 // pred_check_branch
      %38 = sbr.rel (0) target = $region13
    $region12: #{tpu_custom_call.1} parent=1 // pred_region
      %s40 = ssub.s32 256, 256
      %41 = vsyncadd [#allocation6], %s40
      %s42 = sshll.u32 [#allocation7], 4
      %s43 = int_to_ptr.vmem [resolvable:$true] %s42
      %48 = dma.hbm_to_vmem [thread:$0]  %s2, 256, %s43, [#allocation6], 128, 128, 8
    $region13: #{tpu_custom_call.1} parent=1 // pred_fallthru
      _
    // Predicated region
    $region14: #{tpu_custom_call.1} parent=1 // pred_check
      _
    $region15: #{tpu_custom_call.1} parent=1 // pred_check_branch
      %50 = sbr.rel (0) target = $region17
    $region16: #{tpu_custom_call.1} parent=1 // pred_region
      %s52 = ssub.s32 256, 256
      %53 = vsyncadd [#allocation9], %s52
      %s54 = sshll.u32 [#allocation8], 4
      %s55 = int_to_ptr.vmem [resolvable:$true] %s54
      %60 = dma.hbm_to_vmem [thread:$0]  %s3, 256, %s55, [#allocation9], 128, 128, 8
    $region17: #{tpu_custom_call.1} parent=1 // pred_fallthru
      _
    // Predicated region
    $region18: #{tpu_custom_call.1} parent=1 // pred_check
      _
    $region19: #{tpu_custom_call.1} parent=1 // pred_check_branch
      %62 = sbr.rel (0) target = $region21
    $region20: #{tpu_custom_call.1} parent=1 // pred_region
      %63 = dma.done [#allocation3], 256
    $region21: #{tpu_custom_call.1} parent=1 // pred_fallthru
      _
    // Predicated region
    $region22: #{tpu_custom_call.1} parent=1 // pred_check
      _
    $region23: #{tpu_custom_call.1} parent=1 // pred_check_branch
      %65 = sbr.rel (0) target = $region25
    $region24: #{tpu_custom_call.1} parent=1 // pred_region
      %66 = dma.done [#allocation6], 256
    $region25: #{tpu_custom_call.1} parent=1 // pred_fallthru
      _
    // Predicated region
    $region26: #{tpu_custom_call.1} parent=1 // pred_check
      _
    $region27: #{tpu_custom_call.1} parent=1 // pred_check_branch
      %68 = sbr.rel (0) target = $region29
    $region28: #{tpu_custom_call.1} parent=1 // pred_region
      %69 = dma.done [#allocation6], 256
    $region29: #{tpu_custom_call.1} parent=1 // pred_fallthru
      _
    // Predicated region
    $region30: #{tpu_custom_call.1} parent=1 // pred_check
      _
    $region31: #{tpu_custom_call.1} parent=1 // pred_check_branch
      %71 = sbr.rel (0) target = $region33
    $region32: #{tpu_custom_call.1} parent=1 // pred_region
      %72 = dma.done [#allocation9], 256
    $region33: #{tpu_custom_call.1} parent=1 // pred_fallthru
      _
    %p73 = scmp.eq.s32.totalorder 0, 0
    // Predicated region
    $region34: #{tpu_custom_call.1} parent=1 // pred_check
      %p74 = pneg %p73
    $region35: #{tpu_custom_call.1} parent=1 // pred_check_branch
      %76 = sbr.rel (%p74) target = $region37
    $region36: #{tpu_custom_call.1} parent=1 // pred_region
      %77 = vst [vmem:[#allocation10] sm:$0xff] 0.0
      %78 = vst [vmem:[#allocation10 + $0x8] sm:$0xff] 0.0
      %79 = vst [vmem:[#allocation10 + $0x10] sm:$0xff] 0.0
    $region37: #{tpu_custom_call.1} parent=1 // pred_fallthru
      _
    %v80 = vld [vmem:[#allocation2] sm:$0xff]
    %v81 = vld [vmem:[#allocation2 + $0x8] sm:$0xff]
    %v82 = vld [vmem:[#allocation5] sm:$0xff]
    %v83 = vld [vmem:[#allocation5 + $0x8] sm:$0xff]
    %v84 = vsub.f32 %v80, %v82
    %v85 = vsub.f32 %v81, %v83
    %v86 = vld [vmem:[#allocation10] sm:$0xff]
    %v87 = vmul.f32 %v84, %v84
    %v88 = vmul.f32 %v85, %v85
    %v89 = vadd.f32 %v87, %v88
    %v90 = vadd.f32 %v86, %v89
    %91 = vst [vmem:[#allocation10] sm:$0xff] %v90
    %v92 = vld [vmem:[#allocation7] sm:$0xff]
    %v93 = vld [vmem:[#allocation7 + $0x8] sm:$0xff]
    %v94 = vsub.f32 %v80, %v92
    %v95 = vsub.f32 %v81, %v93
    %s96 = scalar_lea.vmem [#allocation10], 8
    %v97 = vld [vmem:[%s96] sm:$0xff]
    %v98 = vmul.f32 %v94, %v94
    %v99 = vmul.f32 %v95, %v95
    %v100 = vadd.f32 %v98, %v99
    %v101 = vadd.f32 %v97, %v100
    %102 = vst [vmem:[%s96] sm:$0xff] %v101
    %v103 = vld [vmem:[#allocation8] sm:$0xff]
    %v104 = vld [vmem:[#allocation8 + $0x8] sm:$0xff]
    %v105 = vsub.f32 %v80, %v103
    %v106 = vsub.f32 %v81, %v104
    %s107 = scalar_lea.vmem [#allocation10], 16
    %v108 = vld [vmem:[%s107] sm:$0xff]
    %v109 = vmul.f32 %v105, %v105
    %v110 = vmul.f32 %v106, %v106
    %v111 = vadd.f32 %v109, %v110
    %v112 = vadd.f32 %v108, %v111
    %113 = vst [vmem:[%s107] sm:$0xff] %v112
    // Predicated region
    $region38: #{tpu_custom_call.1} parent=1 // pred_check
      _
    $region39: #{tpu_custom_call.1} parent=1 // pred_check_branch
      %115 = sbr.rel (0) target = $region41
    $region40: #{tpu_custom_call.1} parent=1 // pred_region
      %s117 = ssub.s32 384, 384
      %118 = vsyncadd [#allocation4], %s117
      %s119 = sshll.u32 [#allocation10], 4
      %s120 = int_to_ptr.vmem [resolvable:$true] %s119
      %125 = dma.vmem_to_hbm [thread:$0]  %s120, 384, %s4, [#allocation4], 128, 128, 8
    $region41: #{tpu_custom_call.1} parent=1 // pred_fallthru
      _
    // Predicated region
    $region42: #{tpu_custom_call.1} parent=1 // pred_check
      _
    $region43: #{tpu_custom_call.1} parent=1 // pred_check_branch
      %127 = sbr.rel (0) target = $region45
    $region44: #{tpu_custom_call.1} parent=1 // pred_region
      %128 = dma.done [#allocation4], 384
    $region45: #{tpu_custom_call.1} parent=1 // pred_fallthru
      _
    %129 = vsyncpa [#allocation3], 1
    %130 = vsyncpa [#allocation6], 1
    %131 = vsyncpa [#allocation9], 1
    %132 = vsyncpa [#allocation4], 1

</llo_original>
